<compile_context>
chip_gen: v6e
topology: v6e:2x2x1
jax: 0.10.0
libtpu: 0.0.40
codegen_flags: <defaults>
</compile_context>

<pallas_src>
import functools

import jax
import jax.numpy as jnp
import numpy as np
from jax import lax
from jax.experimental import pallas as pl
from jax.experimental.pallas import tpu as pltpu

_LANE = 128


def _standardize_train(h, row_mask, n):
    """torch ClassStandardization (training): (h - mean) / (var + 1e-8).

    Single-pass masked statistics over the (padded) class axis: only the first
    `n` rows (the real classes) contribute.  Unbiased variance (ddof=1).
    """
    hm = jnp.where(row_mask, h, 0.0)
    s1 = jnp.sum(hm, axis=0, keepdims=True)
    s2 = jnp.sum(hm * hm, axis=0, keepdims=True)
    mean = s1 * (1.0 / n)
    var = (s2 - n * mean * mean) * (1.0 / (n - 1))
    inv = pl.reciprocal(var + 1e-8)          # exact reciprocal, EUP path
    return (h - mean) * inv


def cnzsl_kernel(x_ref, attrs_ref,
                 w1_ref, b1_ref, w2_ref, b2_ref, w3_ref, b3_ref,
                 out_ref, *, num_classes):
    attrs = attrs_ref[...]
    c_pad = attrs.shape[0]
    # Mask of the real (un-padded) class rows; num_classes is a static int.
    row_mask = lax.broadcasted_iota(jnp.int32, (c_pad, 1), 0) < num_classes

    # Linear(attr_dim, hid) + ReLU
    h = jnp.dot(attrs, w1_ref[...], preferred_element_type=jnp.float32) + b1_ref[...]
    h = jnp.maximum(h, 0.0)

    # Linear(hid, hid)
    h = jnp.dot(h, w2_ref[...], preferred_element_type=jnp.float32) + b2_ref[...]

    # ClassStandardization -> ReLU -> ClassStandardization
    h = _standardize_train(h, row_mask, num_classes)
    h = jnp.maximum(h, 0.0)
    h = _standardize_train(h, row_mask, num_classes)

    # Linear(hid, proto_dim) + ReLU  ->  protos [num_classes_pad, proto_dim_pad]
    protos = jnp.dot(h, w3_ref[...], preferred_element_type=jnp.float32) + b3_ref[...]
    protos = jnp.maximum(protos, 0.0)

    # Row-wise L2 normalization scaled by 5 (rsqrt on the EUP), then
    # logits = x_ns @ protos_ns.T expressed as a dot_general contraction on the
    # shared feature axis (no explicit transpose of protos).
    x = x_ref[...]
    x_sq = jnp.sum(x * x, axis=1, keepdims=True)
    x_ns = x * (5.0 * lax.rsqrt(x_sq))

    p_sq = jnp.sum(protos * protos, axis=1, keepdims=True)
    # Guard only the artificial padded class rows (all-zero) against 0/0;
    # real rows keep the reference's exact (eps-free) behavior.
    p_sq = jnp.where(row_mask, p_sq, 1.0)
    p_ns = protos * (5.0 * lax.rsqrt(p_sq))

    out_ref[...] = lax.dot_general(
        x_ns, p_ns,
        dimension_numbers=(((1,), (1,)), ((), ())),
        preferred_element_type=jnp.float32)


def _pad_to(n, m):
    return n + (-n % m)


@functools.partial(jax.jit, static_argnames=())
def cnzsl_forward(x, attrs, params):
    """x: [B, proto_dim], attrs: [C, attr_dim] -> logits [B, C]."""
    w1, b1, w2, b2, w3, b3 = params
    B, P = x.shape
    C, A = attrs.shape
    H = w1.shape[1]

    # Lane-pad every feature dimension (and the class count) to 128 so all
    # matmul operands are lane-dense and the output store is unmasked.
    A_p, H_p, P_p, C_p = (_pad_to(A, _LANE), _pad_to(H, _LANE),
                          _pad_to(P, _LANE), _pad_to(C, _LANE))

    x_p = jnp.pad(x, ((0, 0), (0, P_p - P)))
    attrs_p = jnp.pad(attrs, ((0, C_p - C), (0, A_p - A)))
    w1_p = jnp.pad(w1, ((0, A_p - A), (0, H_p - H)))
    b1_p = jnp.pad(b1, ((0, 0), (0, H_p - H)))
    w2_p = jnp.pad(w2, ((0, H_p - H), (0, H_p - H)))
    b2_p = jnp.pad(b2, ((0, 0), (0, H_p - H)))
    w3_p = jnp.pad(w3, ((0, H_p - H), (0, P_p - P)))
    b3_p = jnp.pad(b3, ((0, 0), (0, P_p - P)))

    vmem = pl.BlockSpec(memory_space=pltpu.MemorySpace.VMEM)
    kernel = functools.partial(cnzsl_kernel, num_classes=C)

    # Everything fits comfortably in VMEM at these sizes, so a single grid-less
    # pallas_call with whole-array residency is the right structure (adding a
    # grid would only add per-step overhead to a dispatch-bound kernel).
    logits_p = pl.pallas_call(
        kernel,
        out_shape=jax.ShapeDtypeStruct((B, C_p), jnp.float32),
        in_specs=[vmem] * 8,
        out_specs=vmem,
    )(x_p, attrs_p, w1_p, b1_p, w2_p, b2_p, w3_p, b3_p)

    return logits_p[:, :C]


def init_params(key, attr_dim, hid_dim, proto_dim):
    """Deterministic parameter init matching the module's shapes.

    Linear layers follow torch's default uniform(-1/sqrt(fan_in), ...) ranges.
    The last layer's *weight* uses uniform(-b, b) with b = sqrt(3/(hid*proto))
    as in the module's __init__; its *bias* keeps torch's default init
    (uniform with bound 1/sqrt(hid)), matching the reference which only
    overrides model[-2].weight.  Weights are stored pre-transposed as [in, out].
    """
    k1, k2, k3, k4, k5, k6 = jax.random.split(key, 6)
    bound1 = 1.0 / np.sqrt(attr_dim)
    bound2 = 1.0 / np.sqrt(hid_dim)
    bound3 = np.sqrt(3.0 / (hid_dim * proto_dim))
    w1 = jax.random.uniform(k1, (attr_dim, hid_dim), jnp.float32, -bound1, bound1)
    b1 = jax.random.uniform(k2, (1, hid_dim), jnp.float32, -bound1, bound1)
    w2 = jax.random.uniform(k3, (hid_dim, hid_dim), jnp.float32, -bound2, bound2)
    b2 = jax.random.uniform(k4, (1, hid_dim), jnp.float32, -bound2, bound2)
    w3 = jax.random.uniform(k5, (hid_dim, proto_dim), jnp.float32, -bound3, bound3)
    b3 = jax.random.uniform(k6, (1, proto_dim), jnp.float32, -bound2, bound2)
    return (w1, b1, w2, b2, w3, b3)


if __name__ == "__main__":
    ATTR_DIM = 32
    HID_DIM = 32
    PROTO_DIM = 64
    NUM_CLASSES = 16
    BATCH = 8

    key = jax.random.PRNGKey(0)
    kx, ka, kp = jax.random.split(key, 3)
    x = jax.random.normal(kx, (BATCH, PROTO_DIM), jnp.float32)
    attrs = jax.random.normal(ka, (NUM_CLASSES, ATTR_DIM), jnp.float32)
    params = init_params(kp, ATTR_DIM, HID_DIM, PROTO_DIM)

    logits = cnzsl_forward(x, attrs, params)
    jax.block_until_ready(logits)
    assert logits.shape == (BATCH, NUM_CLASSES)
    assert bool(jnp.all(jnp.isfinite(logits)))
    print("KERNEL_OK")
</pallas_src>

<mosaic_0001>
module attributes {stable_mosaic.version = 11 : i64} {
  func.func @cnzsl_kernel(%arg0: memref<8x128xf32, #tpu.memory_space<vmem>>, %arg1: memref<128x128xf32, #tpu.memory_space<vmem>>, %arg2: memref<128x128xf32, #tpu.memory_space<vmem>>, %arg3: memref<1x128xf32, #tpu.memory_space<vmem>>, %arg4: memref<128x128xf32, #tpu.memory_space<vmem>>, %arg5: memref<1x128xf32, #tpu.memory_space<vmem>>, %arg6: memref<128x128xf32, #tpu.memory_space<vmem>>, %arg7: memref<1x128xf32, #tpu.memory_space<vmem>>, %arg8: memref<8x128xf32, #tpu.memory_space<vmem>>) attributes {dimension_semantics = [], scalar_prefetch = 0 : i64, scratch_operands = 0 : i64, tpu.core_type = #tpu.core_type<tc>} {
    %c0 = arith.constant 0 : index
    %c0_0 = arith.constant 0 : index
    %0 = vector.load %arg1[%c0, %c0_0] : memref<128x128xf32, #tpu.memory_space<vmem>>, vector<128x128xf32>
    %1 = tpu.iota {dimensions = array<i32: 0>} : vector<128x1xi32>
    %c16_i32 = arith.constant 16 : i32
    %2 = vector.broadcast %c16_i32 : i32 to vector<128x1xi32>
    %3 = arith.cmpi slt, %1, %2 : vector<128x1xi32>
    %c0_1 = arith.constant 0 : index
    %c0_2 = arith.constant 0 : index
    %4 = vector.load %arg2[%c0_1, %c0_2] : memref<128x128xf32, #tpu.memory_space<vmem>>, vector<128x128xf32>
    %cst = arith.constant dense<0.000000e+00> : vector<128x128xf32>
    %5 = tpu.matmul %0, %4, %cst {dimension_numbers = #tpu.dot_dimension_numbers<[1], [0], [0], [1], [0, 0, 1, 1], [], []>} : vector<128x128xf32>, vector<128x128xf32>, vector<128x128xf32> -> vector<128x128xf32>
    %c0_3 = arith.constant 0 : index
    %c0_4 = arith.constant 0 : index
    %6 = vector.load %arg3[%c0_3, %c0_4] : memref<1x128xf32, #tpu.memory_space<vmem>>, vector<1x128xf32>
    %7 = vector.broadcast %6 : vector<1x128xf32> to vector<128x128xf32>
    %8 = arith.addf %5, %7 : vector<128x128xf32>
    %cst_5 = arith.constant 0.000000e+00 : f32
    %9 = vector.broadcast %cst_5 : f32 to vector<128x128xf32>
    %10 = arith.maximumf %8, %9 : vector<128x128xf32>
    %c0_6 = arith.constant 0 : index
    %c0_7 = arith.constant 0 : index
    %11 = vector.load %arg4[%c0_6, %c0_7] : memref<128x128xf32, #tpu.memory_space<vmem>>, vector<128x128xf32>
    %cst_8 = arith.constant dense<0.000000e+00> : vector<128x128xf32>
    %12 = tpu.matmul %10, %11, %cst_8 {dimension_numbers = #tpu.dot_dimension_numbers<[1], [0], [0], [1], [0, 0, 1, 1], [], []>} : vector<128x128xf32>, vector<128x128xf32>, vector<128x128xf32> -> vector<128x128xf32>
    %c0_9 = arith.constant 0 : index
    %c0_10 = arith.constant 0 : index
    %13 = vector.load %arg5[%c0_9, %c0_10] : memref<1x128xf32, #tpu.memory_space<vmem>>, vector<1x128xf32>
    %14 = vector.broadcast %13 : vector<1x128xf32> to vector<128x128xf32>
    %15 = arith.addf %12, %14 : vector<128x128xf32>
    %cst_11 = arith.constant 0.000000e+00 : f32
    %16 = vector.shape_cast %3 : vector<128x1xi1> to vector<128x1xi1>
    %17 = vector.broadcast %16 : vector<128x1xi1> to vector<128x128xi1>
    %18 = vector.broadcast %cst_11 : f32 to vector<128x128xf32>
    %19 = arith.select %17, %15, %18 : vector<128x128xi1>, vector<128x128xf32>
    %cst_12 = arith.constant dense<0.000000e+00> : vector<128xf32>
    %20 = vector.multi_reduction <add>, %19, %cst_12 [0] : vector<128x128xf32> to vector<128xf32>
    %21 = vector.shape_cast %20 : vector<128xf32> to vector<1x128xf32>
    %22 = arith.mulf %19, %19 : vector<128x128xf32>
    %cst_13 = arith.constant dense<0.000000e+00> : vector<128xf32>
    %23 = vector.multi_reduction <add>, %22, %cst_13 [0] : vector<128x128xf32> to vector<128xf32>
    %24 = vector.shape_cast %23 : vector<128xf32> to vector<1x128xf32>
    %cst_14 = arith.constant 6.250000e-02 : f32
    %25 = vector.broadcast %cst_14 : f32 to vector<1x128xf32>
    %26 = arith.mulf %21, %25 : vector<1x128xf32>
    %cst_15 = arith.constant 1.600000e+01 : f32
    %27 = vector.broadcast %cst_15 : f32 to vector<1x128xf32>
    %28 = arith.mulf %27, %26 : vector<1x128xf32>
    %29 = arith.mulf %28, %26 : vector<1x128xf32>
    %30 = arith.subf %24, %29 : vector<1x128xf32>
    %cst_16 = arith.constant 0.0666666701 : f32
    %31 = vector.broadcast %cst_16 : f32 to vector<1x128xf32>
    %32 = arith.mulf %30, %31 : vector<1x128xf32>
    %cst_17 = arith.constant 9.99999993E-9 : f32
    %33 = vector.broadcast %cst_17 : f32 to vector<1x128xf32>
    %34 = arith.addf %32, %33 : vector<1x128xf32>
    %35 = tpu.reciprocal %34 : vector<1x128xf32> -> vector<1x128xf32>
    %36 = vector.broadcast %26 : vector<1x128xf32> to vector<128x128xf32>
    %37 = arith.subf %15, %36 : vector<128x128xf32>
    %38 = vector.broadcast %35 : vector<1x128xf32> to vector<128x128xf32>
    %39 = arith.mulf %37, %38 : vector<128x128xf32>
    %cst_18 = arith.constant 0.000000e+00 : f32
    %40 = vector.broadcast %cst_18 : f32 to vector<128x128xf32>
    %41 = arith.maximumf %39, %40 : vector<128x128xf32>
    %cst_19 = arith.constant 0.000000e+00 : f32
    %42 = vector.shape_cast %3 : vector<128x1xi1> to vector<128x1xi1>
    %43 = vector.broadcast %42 : vector<128x1xi1> to vector<128x128xi1>
    %44 = vector.broadcast %cst_19 : f32 to vector<128x128xf32>
    %45 = arith.select %43, %41, %44 : vector<128x128xi1>, vector<128x128xf32>
    %cst_20 = arith.constant dense<0.000000e+00> : vector<128xf32>
    %46 = vector.multi_reduction <add>, %45, %cst_20 [0] : vector<128x128xf32> to vector<128xf32>
    %47 = vector.shape_cast %46 : vector<128xf32> to vector<1x128xf32>
    %48 = arith.mulf %45, %45 : vector<128x128xf32>
    %cst_21 = arith.constant dense<0.000000e+00> : vector<128xf32>
    %49 = vector.multi_reduction <add>, %48, %cst_21 [0] : vector<128x128xf32> to vector<128xf32>
    %50 = vector.shape_cast %49 : vector<128xf32> to vector<1x128xf32>
    %cst_22 = arith.constant 6.250000e-02 : f32
    %51 = vector.broadcast %cst_22 : f32 to vector<1x128xf32>
    %52 = arith.mulf %47, %51 : vector<1x128xf32>
    %cst_23 = arith.constant 1.600000e+01 : f32
    %53 = vector.broadcast %cst_23 : f32 to vector<1x128xf32>
    %54 = arith.mulf %53, %52 : vector<1x128xf32>
    %55 = arith.mulf %54, %52 : vector<1x128xf32>
    %56 = arith.subf %50, %55 : vector<1x128xf32>
    %cst_24 = arith.constant 0.0666666701 : f32
    %57 = vector.broadcast %cst_24 : f32 to vector<1x128xf32>
    %58 = arith.mulf %56, %57 : vector<1x128xf32>
    %cst_25 = arith.constant 9.99999993E-9 : f32
    %59 = vector.broadcast %cst_25 : f32 to vector<1x128xf32>
    %60 = arith.addf %58, %59 : vector<1x128xf32>
    %61 = tpu.reciprocal %60 : vector<1x128xf32> -> vector<1x128xf32>
    %62 = vector.broadcast %52 : vector<1x128xf32> to vector<128x128xf32>
    %63 = arith.subf %41, %62 : vector<128x128xf32>
    %64 = vector.broadcast %61 : vector<1x128xf32> to vector<128x128xf32>
    %65 = arith.mulf %63, %64 : vector<128x128xf32>
    %c0_26 = arith.constant 0 : index
    %c0_27 = arith.constant 0 : index
    %66 = vector.load %arg6[%c0_26, %c0_27] : memref<128x128xf32, #tpu.memory_space<vmem>>, vector<128x128xf32>
    %cst_28 = arith.constant dense<0.000000e+00> : vector<128x128xf32>
    %67 = tpu.matmul %65, %66, %cst_28 {dimension_numbers = #tpu.dot_dimension_numbers<[1], [0], [0], [1], [0, 0, 1, 1], [], []>} : vector<128x128xf32>, vector<128x128xf32>, vector<128x128xf32> -> vector<128x128xf32>
    %c0_29 = arith.constant 0 : index
    %c0_30 = arith.constant 0 : index
    %68 = vector.load %arg7[%c0_29, %c0_30] : memref<1x128xf32, #tpu.memory_space<vmem>>, vector<1x128xf32>
    %69 = vector.broadcast %68 : vector<1x128xf32> to vector<128x128xf32>
    %70 = arith.addf %67, %69 : vector<128x128xf32>
    %cst_31 = arith.constant 0.000000e+00 : f32
    %71 = vector.broadcast %cst_31 : f32 to vector<128x128xf32>
    %72 = arith.maximumf %70, %71 : vector<128x128xf32>
    %c0_32 = arith.constant 0 : index
    %c0_33 = arith.constant 0 : index
    %73 = vector.load %arg0[%c0_32, %c0_33] : memref<8x128xf32, #tpu.memory_space<vmem>>, vector<8x128xf32>
    %74 = arith.mulf %73, %73 : vector<8x128xf32>
    %cst_34 = arith.constant dense<0.000000e+00> : vector<8xf32>
    %75 = vector.multi_reduction <add>, %74, %cst_34 [1] : vector<8x128xf32> to vector<8xf32>
    %76 = vector.shape_cast %75 : vector<8xf32> to vector<8x1xf32>
    %77 = math.rsqrt %76 : vector<8x1xf32>
    %cst_35 = arith.constant 5.000000e+00 : f32
    %78 = vector.broadcast %cst_35 : f32 to vector<8x1xf32>
    %79 = arith.mulf %78, %77 : vector<8x1xf32>
    %80 = vector.broadcast %79 : vector<8x1xf32> to vector<8x128xf32>
    %81 = arith.mulf %73, %80 : vector<8x128xf32>
    %82 = arith.mulf %72, %72 : vector<128x128xf32>
    %cst_36 = arith.constant dense<0.000000e+00> : vector<128xf32>
    %83 = vector.multi_reduction <add>, %82, %cst_36 [1] : vector<128x128xf32> to vector<128xf32>
    %84 = vector.shape_cast %83 : vector<128xf32> to vector<128x1xf32>
    %cst_37 = arith.constant 1.000000e+00 : f32
    %85 = vector.broadcast %cst_37 : f32 to vector<128x1xf32>
    %86 = arith.select %3, %84, %85 : vector<128x1xi1>, vector<128x1xf32>
    %87 = math.rsqrt %86 : vector<128x1xf32>
    %cst_38 = arith.constant 5.000000e+00 : f32
    %88 = vector.broadcast %cst_38 : f32 to vector<128x1xf32>
    %89 = arith.mulf %88, %87 : vector<128x1xf32>
    %90 = vector.broadcast %89 : vector<128x1xf32> to vector<128x128xf32>
    %91 = arith.mulf %72, %90 : vector<128x128xf32>
    %cst_39 = arith.constant dense<0.000000e+00> : vector<8x128xf32>
    %92 = tpu.matmul %81, %91, %cst_39 {dimension_numbers = #tpu.dot_dimension_numbers<[1], [1], [0], [0], [0, 0, 1, 0], [], []>} : vector<8x128xf32>, vector<128x128xf32>, vector<8x128xf32> -> vector<8x128xf32>
    %c0_40 = arith.constant 0 : index
    %c0_41 = arith.constant 0 : index
    %93 = vector.load %arg8[%c0_40, %c0_41] : memref<8x128xf32, #tpu.memory_space<vmem>>, vector<8x128xf32>
    tpu.vector_store %arg8[%c0_40, %c0_41], %92 {strides = array<i32>} : memref<8x128xf32, #tpu.memory_space<vmem>>, vector<8x128xf32>,
    return
  }
}

</mosaic_0001>

<llo_original>
// kernel: cnzsl_forward.1
$region0: #{cnzsl_forward.1}
  #allocation0 [shape = 'u32[]', space=smem, size = 0x4, offset = 0x4, fixed_abs, tag = 'smem constant byte address 0x4 - core index']
  #allocation1 [shape = 'u32[144,128]{1,0:T(1,128)}', space=vmem, size = 0x12000, scoped, tag = 'internal scratch']
  %s0 = inlined_call_operand.vmem [shape: f32[8,128], index: 0, kind: input, shape index: {}]
  %s1 = inlined_call_operand.vmem [shape: f32[128,128], index: 1, kind: input, shape index: {}]
  %s2 = inlined_call_operand.vmem [shape: f32[128,128], index: 2, kind: input, shape index: {}]
  %s3 = inlined_call_operand.vmem [shape: f32[1,128], index: 3, kind: input, shape index: {}]
  %s4 = inlined_call_operand.vmem [shape: f32[128,128], index: 4, kind: input, shape index: {}]
  %s5 = inlined_call_operand.vmem [shape: f32[1,128], index: 5, kind: input, shape index: {}]
  %s6 = inlined_call_operand.vmem [shape: f32[128,128], index: 6, kind: input, shape index: {}]
  %s7 = inlined_call_operand.vmem [shape: f32[1,128], index: 7, kind: input, shape index: {}]
  %s8 = inlined_call_operand.hbm [shape: f32[8,128], index: 8, kind: output, shape index: {}]
  %s9 = sld [smem:[#allocation0]]
  $region42: #{cnzsl_forward.1} parent=0
    _
  %s11 = ssub.s32 1, %s9
  %s12 = scalar_select 0, %s11, %s9
  $region1: #{cnzsl_forward.1} parent=0
    #allocation2 [shape = 'u8[4096]{0}', space=vmem, size = 0x1000, scoped, tag = 'output window, operand 0, single buffered']
    #allocation3 [shape = 's32[1]{0}', space=sflag, size = 0x4, scoped, tag = 'scoped memory for cnzsl_forward.1']
    %13 = vsyncpa [#allocation3], 0
    // Predicated region
    $region2: #{cnzsl_forward.1} parent=1 // pred_check
      _
    $region3: #{cnzsl_forward.1} parent=1 // pred_check_branch
      %15 = sbr.rel (0) target = $region5
    $region4: #{cnzsl_forward.1} parent=1 // pred_region
      _
    $region5: #{cnzsl_forward.1} parent=1 // pred_fallthru
      _
    // Predicated region
    $region6: #{cnzsl_forward.1} parent=1 // pred_check
      _
    $region7: #{cnzsl_forward.1} parent=1 // pred_check_branch
      %17 = sbr.rel (0) target = $region9
    $region8: #{cnzsl_forward.1} parent=1 // pred_region
      _
    $region9: #{cnzsl_forward.1} parent=1 // pred_fallthru
      _
    // Predicated region
    $region10: #{cnzsl_forward.1} parent=1 // pred_check
      _
    $region11: #{cnzsl_forward.1} parent=1 // pred_check_branch
      %19 = sbr.rel (0) target = $region13
    $region12: #{cnzsl_forward.1} parent=1 // pred_region
      _
    $region13: #{cnzsl_forward.1} parent=1 // pred_fallthru
      _
    // Predicated region
    $region14: #{cnzsl_forward.1} parent=1 // pred_check
      _
    $region15: #{cnzsl_forward.1} parent=1 // pred_check_branch
      %21 = sbr.rel (0) target = $region17
    $region16: #{cnzsl_forward.1} parent=1 // pred_region
      _
    $region17: #{cnzsl_forward.1} parent=1 // pred_fallthru
      _
    // Predicated region
    $region18: #{cnzsl_forward.1} parent=1 // pred_check
      _
    $region19: #{cnzsl_forward.1} parent=1 // pred_check_branch
      %23 = sbr.rel (0) target = $region21
    $region20: #{cnzsl_forward.1} parent=1 // pred_region
      _
    $region21: #{cnzsl_forward.1} parent=1 // pred_fallthru
      _
    // Predicated region
    $region22: #{cnzsl_forward.1} parent=1 // pred_check
      _
    $region23: #{cnzsl_forward.1} parent=1 // pred_check_branch
      %25 = sbr.rel (0) target = $region25
    $region24: #{cnzsl_forward.1} parent=1 // pred_region
      _
    $region25: #{cnzsl_forward.1} parent=1 // pred_fallthru
      _
    // Predicated region
    $region26: #{cnzsl_forward.1} parent=1 // pred_check
      _
    $region27: #{cnzsl_forward.1} parent=1 // pred_check_branch
      %27 = sbr.rel (0) target = $region29
    $region28: #{cnzsl_forward.1} parent=1 // pred_region
      _
    $region29: #{cnzsl_forward.1} parent=1 // pred_fallthru
      _
    // Predicated region
    $region30: #{cnzsl_forward.1} parent=1 // pred_check
      _
    $region31: #{cnzsl_forward.1} parent=1 // pred_check_branch
      %29 = sbr.rel (0) target = $region33
    $region32: #{cnzsl_forward.1} parent=1 // pred_region
      _
    $region33: #{cnzsl_forward.1} parent=1 // pred_fallthru
      _
    %v30 = vld [vmem:[%s1] sm:$0xff]
    %v31 = vld [vmem:[%s1 + $0x8] sm:$0xff]
    %v32 = vld [vmem:[%s1 + $0x10] sm:$0xff]
    %v33 = vld [vmem:[%s1 + $0x18] sm:$0xff]
    %v34 = vld [vmem:[%s1 + $0x20] sm:$0xff]
    %v35 = vld [vmem:[%s1 + $0x28] sm:$0xff]
    %v36 = vld [vmem:[%s1 + $0x30] sm:$0xff]
    %v37 = vld [vmem:[%s1 + $0x38] sm:$0xff]
    %v38 = vld [vmem:[%s1 + $0x40] sm:$0xff]
    %v39 = vld [vmem:[%s1 + $0x48] sm:$0xff]
    %v40 = vld [vmem:[%s1 + $0x50] sm:$0xff]
    %v41 = vld [vmem:[%s1 + $0x58] sm:$0xff]
    %v42 = vld [vmem:[%s1 + $0x60] sm:$0xff]
    %v43 = vld [vmem:[%s1 + $0x68] sm:$0xff]
    %v44 = vld [vmem:[%s1 + $0x70] sm:$0xff]
    %v45 = vld [vmem:[%s1 + $0x78] sm:$0xff]
    %v46 = vlaneseq
    %v47 = vshrl.u32 %v46, 7
    %v48 = vadd.s32 %v47, 8
    %v49 = vadd.s32 %v47, 16
    %v50 = vadd.s32 %v47, 24
    %v51 = vadd.s32 %v47, 32
    %v52 = vadd.s32 %v47, 40
    %v53 = vadd.s32 %v47, 48
    %v54 = vadd.s32 %v47, 56
    %v55 = vadd.s32 %v47, 64
    %v56 = vadd.s32 %v47, 72
    %v57 = vadd.s32 %v47, 80
    %v58 = vadd.s32 %v47, 88
    %v59 = vadd.s32 %v47, 96
    %v60 = vadd.s32 %v47, 104
    %v61 = vadd.s32 %v47, 112
    %v62 = vadd.s32 %v47, 120
    %vm63 = vcmp.lt.s32.totalorder %v47, 16
    %vm64 = vcmp.lt.s32.totalorder %v48, 16
    %vm65 = vcmp.lt.s32.totalorder %v49, 16
    %vm66 = vcmp.lt.s32.totalorder %v50, 16
    %vm67 = vcmp.lt.s32.totalorder %v51, 16
    %vm68 = vcmp.lt.s32.totalorder %v52, 16
    %vm69 = vcmp.lt.s32.totalorder %v53, 16
    %vm70 = vcmp.lt.s32.totalorder %v54, 16
    %vm71 = vcmp.lt.s32.totalorder %v55, 16
    %vm72 = vcmp.lt.s32.totalorder %v56, 16
    %vm73 = vcmp.lt.s32.totalorder %v57, 16
    %vm74 = vcmp.lt.s32.totalorder %v58, 16
    %vm75 = vcmp.lt.s32.totalorder %v59, 16
    %vm76 = vcmp.lt.s32.totalorder %v60, 16
    %vm77 = vcmp.lt.s32.totalorder %v61, 16
    %vm78 = vcmp.lt.s32.totalorder %v62, 16
    %v79 = vld [vmem:[%s2] sm:$0xff]
    %v80 = vld [vmem:[%s2 + $0x8] sm:$0xff]
    %v81 = vld [vmem:[%s2 + $0x10] sm:$0xff]
    %v82 = vld [vmem:[%s2 + $0x18] sm:$0xff]
    %v83 = vld [vmem:[%s2 + $0x20] sm:$0xff]
    %v84 = vld [vmem:[%s2 + $0x28] sm:$0xff]
    %v85 = vld [vmem:[%s2 + $0x30] sm:$0xff]
    %v86 = vld [vmem:[%s2 + $0x38] sm:$0xff]
    %v87 = vld [vmem:[%s2 + $0x40] sm:$0xff]
    %v88 = vld [vmem:[%s2 + $0x48] sm:$0xff]
    %v89 = vld [vmem:[%s2 + $0x50] sm:$0xff]
    %v90 = vld [vmem:[%s2 + $0x58] sm:$0xff]
    %v91 = vld [vmem:[%s2 + $0x60] sm:$0xff]
    %v92 = vld [vmem:[%s2 + $0x68] sm:$0xff]
    %v93 = vld [vmem:[%s2 + $0x70] sm:$0xff]
    %v94 = vld [vmem:[%s2 + $0x78] sm:$0xff]
    %v95 = vld [vmem:[%s3] sm:$0x1]
    %v97 = vlaneseq
    %v98 = vshrl.u32 %v97, 7
    %v99 = vsub.s32 0, %v98
    %v100 = vrot.slane %v95, %v99
    %102 = vmatprep.subr.mxu0 0.0
    %103 = vmatpush1.msra.mxu0 %v94
    %104 = vmatprep.subr.mxu0 0.0
    %105 = vmatpush1.msra.mxu0 %v93
    %106 = vmatprep.subr.mxu0 0.0
    %107 = vmatpush1.msra.mxu0 %v92
    %108 = vmatprep.subr.mxu0 0.0
    %109 = vmatpush1.msra.mxu0 %v91
    %110 = vmatprep.subr.mxu0 0.0
    %111 = vmatpush1.msra.mxu0 %v90
    %112 = vmatprep.subr.mxu0 0.0
    %113 = vmatpush1.msra.mxu0 %v89
    %114 = vmatprep.subr.mxu0 0.0
    %115 = vmatpush1.msra.mxu0 %v88
    %116 = vmatprep.subr.mxu0 0.0
    %117 = vmatpush1.msra.mxu0 %v87
    %118 = vmatprep.subr.mxu0 0.0
    %119 = vmatpush1.msra.mxu0 %v86
    %120 = vmatprep.subr.mxu0 0.0
    %121 = vmatpush1.msra.mxu0 %v85
    %122 = vmatprep.subr.mxu0 0.0
    %123 = vmatpush1.msra.mxu0 %v84
    %124 = vmatprep.subr.mxu0 0.0
    %125 = vmatpush1.msra.mxu0 %v83
    %126 = vmatprep.subr.mxu0 0.0
    %127 = vmatpush1.msra.mxu0 %v82
    %128 = vmatprep.subr.mxu0 0.0
    %129 = vmatpush1.msra.mxu0 %v81
    %130 = vmatprep.subr.mxu0 0.0
    %131 = vmatpush1.msra.mxu0 %v80
    %132 = vmatprep.subr.mxu0 0.0
    %133 = vmatpush1.msra.mxu0 %v79
    %134 = vmatprep.subr.mxu0 0.0
    %135 = vmatpush2.msra.mxu0 0.0
    %136 = vmatprep.subr.mxu0 0.0
    %137 = vmatpush2.msra.mxu0 0.0
    %138 = vmatprep.subr.mxu0 0.0
    %139 = vmatpush2.msra.mxu0 0.0
    %140 = vmatprep.subr.mxu0 0.0
    %141 = vmatpush2.msra.mxu0 0.0
    %142 = vmatprep.subr.mxu0 0.0
    %143 = vmatpush2.msra.mxu0 0.0
    %144 = vmatprep.subr.mxu0 0.0
    %145 = vmatpush2.msra.mxu0 0.0
    %146 = vmatprep.subr.mxu0 0.0
    %147 = vmatpush2.msra.mxu0 0.0
    %148 = vmatprep.subr.mxu0 0.0
    %149 = vmatpush2.msra.mxu0 0.0
    %150 = vmatprep.subr.mxu0 0.0
    %151 = vmatpush2.msra.mxu0 0.0
    %152 = vmatprep.subr.mxu0 0.0
    %153 = vmatpush2.msra.mxu0 0.0
    %154 = vmatprep.subr.mxu0 0.0
    %155 = vmatpush2.msra.mxu0 0.0
    %156 = vmatprep.subr.mxu0 0.0
    %157 = vmatpush2.msra.mxu0 0.0
    %158 = vmatprep.subr.mxu0 0.0
    %159 = vmatpush2.msra.mxu0 0.0
    %160 = vmatprep.subr.mxu0 0.0
    %161 = vmatpush2.msra.mxu0 0.0
    %162 = vmatprep.subr.mxu0 0.0
    %163 = vmatpush2.msra.mxu0 0.0
    %164 = vmatprep.subr.mxu0 0.0
    %165 = vmatpush2.msra.mxu0 0.0
    %166 = vmatprep.mubr.f32.mxu0 0.0
    %167 = vmatmul.mubr.f32.gmra.mxu0 %v30
    %v168 = vpop.f32.mrf.mxu0
    %v169 = vadd.f32 %v100, %v168
    %v170 = vpop.f32.mrf.mxu0
    %171 = vmatprep.mubr.f32.mxu0 0.0
    %172 = vmatmul.mubr.f32.gmra.mxu0 %v31
    %v173 = vpop.f32.mrf.mxu0
    %v174 = vadd.f32 %v100, %v173
    %v175 = vpop.f32.mrf.mxu0
    %176 = vmatprep.mubr.f32.mxu0 0.0
    %177 = vmatmul.mubr.f32.gmra.mxu0 %v32
    %v178 = vpop.f32.mrf.mxu0
    %v179 = vadd.f32 %v100, %v178
    %v180 = vpop.f32.mrf.mxu0
    %181 = vmatprep.mubr.f32.mxu0 0.0
    %182 = vmatmul.mubr.f32.gmra.mxu0 %v33
    %v183 = vpop.f32.mrf.mxu0
    %v184 = vadd.f32 %v100, %v183
    %v185 = vpop.f32.mrf.mxu0
    %186 = vmatprep.mubr.f32.mxu0 0.0
    %187 = vmatmul.mubr.f32.gmra.mxu0 %v34
    %v188 = vpop.f32.mrf.mxu0
    %v189 = vadd.f32 %v100, %v188
    %v190 = vpop.f32.mrf.mxu0
    %191 = vmatprep.mubr.f32.mxu0 0.0
    %192 = vmatmul.mubr.f32.gmra.mxu0 %v35
    %v193 = vpop.f32.mrf.mxu0
    %v194 = vadd.f32 %v100, %v193
    %v195 = vpop.f32.mrf.mxu0
    %196 = vmatprep.mubr.f32.mxu0 0.0
    %197 = vmatmul.mubr.f32.gmra.mxu0 %v36
    %v198 = vpop.f32.mrf.mxu0
    %v199 = vadd.f32 %v100, %v198
    %v200 = vpop.f32.mrf.mxu0
    %201 = vmatprep.mubr.f32.mxu0 0.0
    %202 = vmatmul.mubr.f32.gmra.mxu0 %v37
    %v203 = vpop.f32.mrf.mxu0
    %v204 = vadd.f32 %v100, %v203
    %v205 = vpop.f32.mrf.mxu0
    %206 = vmatprep.mubr.f32.mxu0 0.0
    %207 = vmatmul.mubr.f32.gmra.mxu0 %v38
    %v208 = vpop.f32.mrf.mxu0
    %v209 = vadd.f32 %v100, %v208
    %v210 = vpop.f32.mrf.mxu0
    %211 = vmatprep.mubr.f32.mxu0 0.0
    %212 = vmatmul.mubr.f32.gmra.mxu0 %v39
    %v213 = vpop.f32.mrf.mxu0
    %v214 = vadd.f32 %v100, %v213
    %v215 = vpop.f32.mrf.mxu0
    %216 = vmatprep.mubr.f32.mxu0 0.0
    %217 = vmatmul.mubr.f32.gmra.mxu0 %v40
    %v218 = vpop.f32.mrf.mxu0
    %v219 = vadd.f32 %v100, %v218
    %v220 = vpop.f32.mrf.mxu0
    %221 = vmatprep.mubr.f32.mxu0 0.0
    %222 = vmatmul.mubr.f32.gmra.mxu0 %v41
    %v223 = vpop.f32.mrf.mxu0
    %v224 = vadd.f32 %v100, %v223
    %v225 = vpop.f32.mrf.mxu0
    %226 = vmatprep.mubr.f32.mxu0 0.0
    %227 = vmatmul.mubr.f32.gmra.mxu0 %v42
    %v228 = vpop.f32.mrf.mxu0
    %v229 = vadd.f32 %v100, %v228
    %v230 = vpop.f32.mrf.mxu0
    %231 = vmatprep.mubr.f32.mxu0 0.0
    %232 = vmatmul.mubr.f32.gmra.mxu0 %v43
    %v233 = vpop.f32.mrf.mxu0
    %v234 = vadd.f32 %v100, %v233
    %v235 = vpop.f32.mrf.mxu0
    %236 = vmatprep.mubr.f32.mxu0 0.0
    %237 = vmatmul.mubr.f32.gmra.mxu0 %v44
    %v238 = vpop.f32.mrf.mxu0
    %v239 = vadd.f32 %v100, %v238
    %v240 = vpop.f32.mrf.mxu0
    %241 = vmatprep.mubr.f32.mxu0 0.0
    %242 = vmatmul.mubr.f32.gmra.mxu0 %v45
    %v243 = vpop.f32.mrf.mxu0
    %v244 = vadd.f32 %v100, %v243
    %v245 = vpop.f32.mrf.mxu0
    %246 = vdwg.mxu0
    %v247 = vmax.f32 %v169, 0.0
    %v248 = vmax.f32 %v174, 0.0
    %v249 = vmax.f32 %v179, 0.0
    %v250 = vmax.f32 %v184, 0.0
    %v251 = vmax.f32 %v189, 0.0
    %v252 = vmax.f32 %v194, 0.0
    %v253 = vmax.f32 %v199, 0.0
    %v254 = vmax.f32 %v204, 0.0
    %v255 = vmax.f32 %v209, 0.0
    %v256 = vmax.f32 %v214, 0.0
    %v257 = vmax.f32 %v219, 0.0
    %v258 = vmax.f32 %v224, 0.0
    %v259 = vmax.f32 %v229, 0.0
    %v260 = vmax.f32 %v234, 0.0
    %v261 = vmax.f32 %v239, 0.0
    %v262 = vmax.f32 %v244, 0.0
    %v263 = vld [vmem:[%s4] sm:$0xff]
    %v264 = vld [vmem:[%s4 + $0x8] sm:$0xff]
    %v265 = vld [vmem:[%s4 + $0x10] sm:$0xff]
    %v266 = vld [vmem:[%s4 + $0x18] sm:$0xff]
    %v267 = vld [vmem:[%s4 + $0x20] sm:$0xff]
    %v268 = vld [vmem:[%s4 + $0x28] sm:$0xff]
    %v269 = vld [vmem:[%s4 + $0x30] sm:$0xff]
    %v270 = vld [vmem:[%s4 + $0x38] sm:$0xff]
    %v271 = vld [vmem:[%s4 + $0x40] sm:$0xff]
    %v272 = vld [vmem:[%s4 + $0x48] sm:$0xff]
    %v273 = vld [vmem:[%s4 + $0x50] sm:$0xff]
    %v274 = vld [vmem:[%s4 + $0x58] sm:$0xff]
    %v275 = vld [vmem:[%s4 + $0x60] sm:$0xff]
    %v276 = vld [vmem:[%s4 + $0x68] sm:$0xff]
    %v277 = vld [vmem:[%s4 + $0x70] sm:$0xff]
    %v278 = vld [vmem:[%s4 + $0x78] sm:$0xff]
    %v279 = vld [vmem:[%s5] sm:$0x1]
    %v281 = vlaneseq
    %v282 = vshrl.u32 %v281, 7
    %v283 = vsub.s32 0, %v282
    %v284 = vrot.slane %v279, %v283
    %286 = vmatprep.subr.mxu0 0.0
    %287 = vmatpush1.msra.mxu0 %v278
    %288 = vmatprep.subr.mxu0 0.0
    %289 = vmatpush1.msra.mxu0 %v277
    %290 = vmatprep.subr.mxu0 0.0
    %291 = vmatpush1.msra.mxu0 %v276
    %292 = vmatprep.subr.mxu0 0.0
    %293 = vmatpush1.msra.mxu0 %v275
    %294 = vmatprep.subr.mxu0 0.0
    %295 = vmatpush1.msra.mxu0 %v274
    %296 = vmatprep.subr.mxu0 0.0
    %297 = vmatpush1.msra.mxu0 %v273
    %298 = vmatprep.subr.mxu0 0.0
    %299 = vmatpush1.msra.mxu0 %v272
    %300 = vmatprep.subr.mxu0 0.0
    %301 = vmatpush1.msra.mxu0 %v271
    %302 = vmatprep.subr.mxu0 0.0
    %303 = vmatpush1.msra.mxu0 %v270
    %304 = vmatprep.subr.mxu0 0.0
    %305 = vmatpush1.msra.mxu0 %v269
    %306 = vmatprep.subr.mxu0 0.0
    %307 = vmatpush1.msra.mxu0 %v268
    %308 = vmatprep.subr.mxu0 0.0
    %309 = vmatpush1.msra.mxu0 %v267
    %310 = vmatprep.subr.mxu0 0.0
    %311 = vmatpush1.msra.mxu0 %v266
    %312 = vmatprep.subr.mxu0 0.0
    %313 = vmatpush1.msra.mxu0 %v265
    %314 = vmatprep.subr.mxu0 0.0
    %315 = vmatpush1.msra.mxu0 %v264
    %316 = vmatprep.subr.mxu0 0.0
    %317 = vmatpush1.msra.mxu0 %v263
    %318 = vmatprep.subr.mxu0 0.0
    %319 = vmatpush2.msra.mxu0 0.0
    %320 = vmatprep.subr.mxu0 0.0
    %321 = vmatpush2.msra.mxu0 0.0
    %322 = vmatprep.subr.mxu0 0.0
    %323 = vmatpush2.msra.mxu0 0.0
    %324 = vmatprep.subr.mxu0 0.0
    %325 = vmatpush2.msra.mxu0 0.0
    %326 = vmatprep.subr.mxu0 0.0
    %327 = vmatpush2.msra.mxu0 0.0
    %328 = vmatprep.subr.mxu0 0.0
    %329 = vmatpush2.msra.mxu0 0.0
    %330 = vmatprep.subr.mxu0 0.0
    %331 = vmatpush2.msra.mxu0 0.0
    %332 = vmatprep.subr.mxu0 0.0
    %333 = vmatpush2.msra.mxu0 0.0
    %334 = vmatprep.subr.mxu0 0.0
    %335 = vmatpush2.msra.mxu0 0.0
    %336 = vmatprep.subr.mxu0 0.0
    %337 = vmatpush2.msra.mxu0 0.0
    %338 = vmatprep.subr.mxu0 0.0
    %339 = vmatpush2.msra.mxu0 0.0
    %340 = vmatprep.subr.mxu0 0.0
    %341 = vmatpush2.msra.mxu0 0.0
    %342 = vmatprep.subr.mxu0 0.0
    %343 = vmatpush2.msra.mxu0 0.0
    %344 = vmatprep.subr.mxu0 0.0
    %345 = vmatpush2.msra.mxu0 0.0
    %346 = vmatprep.subr.mxu0 0.0
    %347 = vmatpush2.msra.mxu0 0.0
    %348 = vmatprep.subr.mxu0 0.0
    %349 = vmatpush2.msra.mxu0 0.0
    %350 = vmatprep.mubr.f32.mxu0 0.0
    %351 = vmatmul.mubr.f32.gmra.mxu0 %v247
    %v352 = vpop.f32.mrf.mxu0
    %v353 = vadd.f32 %v284, %v352
    %v354 = vpop.f32.mrf.mxu0
    %355 = vmatprep.mubr.f32.mxu0 0.0
    %356 = vmatmul.mubr.f32.gmra.mxu0 %v248
    %v357 = vpop.f32.mrf.mxu0
    %v358 = vadd.f32 %v284, %v357
    %v359 = vpop.f32.mrf.mxu0
    %360 = vmatprep.mubr.f32.mxu0 0.0
    %361 = vmatmul.mubr.f32.gmra.mxu0 %v249
    %v362 = vpop.f32.mrf.mxu0
    %v363 = vadd.f32 %v284, %v362
    %v364 = vpop.f32.mrf.mxu0
    %365 = vmatprep.mubr.f32.mxu0 0.0
    %366 = vmatmul.mubr.f32.gmra.mxu0 %v250
    %v367 = vpop.f32.mrf.mxu0
    %v368 = vadd.f32 %v284, %v367
    %v369 = vpop.f32.mrf.mxu0
    %370 = vmatprep.mubr.f32.mxu0 0.0
    %371 = vmatmul.mubr.f32.gmra.mxu0 %v251
    %v372 = vpop.f32.mrf.mxu0
    %v373 = vadd.f32 %v284, %v372
    %v374 = vpop.f32.mrf.mxu0
    %375 = vmatprep.mubr.f32.mxu0 0.0
    %376 = vmatmul.mubr.f32.gmra.mxu0 %v252
    %v377 = vpop.f32.mrf.mxu0
    %v378 = vadd.f32 %v284, %v377
    %v379 = vpop.f32.mrf.mxu0
    %380 = vmatprep.mubr.f32.mxu0 0.0
    %381 = vmatmul.mubr.f32.gmra.mxu0 %v253
    %v382 = vpop.f32.mrf.mxu0
    %v383 = vadd.f32 %v284, %v382
    %v384 = vpop.f32.mrf.mxu0
    %385 = vmatprep.mubr.f32.mxu0 0.0
    %386 = vmatmul.mubr.f32.gmra.mxu0 %v254
    %v387 = vpop.f32.mrf.mxu0
    %v388 = vadd.f32 %v284, %v387
    %v389 = vpop.f32.mrf.mxu0
    %390 = vmatprep.mubr.f32.mxu0 0.0
    %391 = vmatmul.mubr.f32.gmra.mxu0 %v255
    %v392 = vpop.f32.mrf.mxu0
    %v393 = vadd.f32 %v284, %v392
    %v394 = vpop.f32.mrf.mxu0
    %395 = vmatprep.mubr.f32.mxu0 0.0
    %396 = vmatmul.mubr.f32.gmra.mxu0 %v256
    %v397 = vpop.f32.mrf.mxu0
    %v398 = vadd.f32 %v284, %v397
    %v399 = vpop.f32.mrf.mxu0
    %400 = vmatprep.mubr.f32.mxu0 0.0
    %401 = vmatmul.mubr.f32.gmra.mxu0 %v257
    %v402 = vpop.f32.mrf.mxu0
    %v403 = vadd.f32 %v284, %v402
    %v404 = vpop.f32.mrf.mxu0
    %405 = vmatprep.mubr.f32.mxu0 0.0
    %406 = vmatmul.mubr.f32.gmra.mxu0 %v258
    %v407 = vpop.f32.mrf.mxu0
    %v408 = vadd.f32 %v284, %v407
    %v409 = vpop.f32.mrf.mxu0
    %410 = vmatprep.mubr.f32.mxu0 0.0
    %411 = vmatmul.mubr.f32.gmra.mxu0 %v259
    %v412 = vpop.f32.mrf.mxu0
    %v413 = vadd.f32 %v284, %v412
    %v414 = vpop.f32.mrf.mxu0
    %415 = vmatprep.mubr.f32.mxu0 0.0
    %416 = vmatmul.mubr.f32.gmra.mxu0 %v260
    %v417 = vpop.f32.mrf.mxu0
    %v418 = vadd.f32 %v284, %v417
    %v419 = vpop.f32.mrf.mxu0
    %420 = vmatprep.mubr.f32.mxu0 0.0
    %421 = vmatmul.mubr.f32.gmra.mxu0 %v261
    %v422 = vpop.f32.mrf.mxu0
    %v423 = vadd.f32 %v284, %v422
    %v424 = vpop.f32.mrf.mxu0
    %425 = vmatprep.mubr.f32.mxu0 0.0
    %426 = vmatmul.mubr.f32.gmra.mxu0 %v262
    %v427 = vpop.f32.mrf.mxu0
    %v428 = vadd.f32 %v284, %v427
    %v429 = vpop.f32.mrf.mxu0
    %430 = vdwg.mxu0
    %v431 = vsel %vm63, 1, 0
    %v432 = vsel %vm64, 1, 0
    %v433 = vsel %vm65, 1, 0
    %v434 = vsel %vm66, 1, 0
    %v435 = vsel %vm67, 1, 0
    %v436 = vsel %vm68, 1, 0
    %v437 = vsel %vm69, 1, 0
    %v438 = vsel %vm70, 1, 0
    %v439 = vsel %vm71, 1, 0
    %v440 = vsel %vm72, 1, 0
    %v441 = vsel %vm73, 1, 0
    %v442 = vsel %vm74, 1, 0
    %v443 = vsel %vm75, 1, 0
    %v444 = vsel %vm76, 1, 0
    %v445 = vsel %vm77, 1, 0
    %v446 = vsel %vm78, 1, 0
    %vm447 = vcmp.eq.s32.totalorder %v431, 1
    %vm448 = vcmp.eq.s32.totalorder %v432, 1
    %vm449 = vcmp.eq.s32.totalorder %v433, 1
    %vm450 = vcmp.eq.s32.totalorder %v434, 1
    %vm451 = vcmp.eq.s32.totalorder %v435, 1
    %vm452 = vcmp.eq.s32.totalorder %v436, 1
    %vm453 = vcmp.eq.s32.totalorder %v437, 1
    %vm454 = vcmp.eq.s32.totalorder %v438, 1
    %vm455 = vcmp.eq.s32.totalorder %v439, 1
    %vm456 = vcmp.eq.s32.totalorder %v440, 1
    %vm457 = vcmp.eq.s32.totalorder %v441, 1
    %vm458 = vcmp.eq.s32.totalorder %v442, 1
    %vm459 = vcmp.eq.s32.totalorder %v443, 1
    %vm460 = vcmp.eq.s32.totalorder %v444, 1
    %vm461 = vcmp.eq.s32.totalorder %v445, 1
    %vm462 = vcmp.eq.s32.totalorder %v446, 1
    %v463 = vsel %vm447, %v353, 0.0
    %v464 = vsel %vm448, %v358, 0.0
    %v465 = vsel %vm449, %v363, 0.0
    %v466 = vsel %vm450, %v368, 0.0
    %v467 = vsel %vm451, %v373, 0.0
    %v468 = vsel %vm452, %v378, 0.0
    %v469 = vsel %vm453, %v383, 0.0
    %v470 = vsel %vm454, %v388, 0.0
    %v471 = vsel %vm455, %v393, 0.0
    %v472 = vsel %vm456, %v398, 0.0
    %v473 = vsel %vm457, %v403, 0.0
    %v474 = vsel %vm458, %v408, 0.0
    %v475 = vsel %vm459, %v413, 0.0
    %v476 = vsel %vm460, %v418, 0.0
    %v477 = vsel %vm461, %v423, 0.0
    %v478 = vsel %vm462, %v428, 0.0
    %v479 = vadd.f32 %v463, %v464
    %v480 = vadd.f32 %v479, %v465
    %v481 = vadd.f32 %v480, %v466
    %v482 = vadd.f32 %v481, %v467
    %v483 = vadd.f32 %v482, %v468
    %v484 = vadd.f32 %v483, %v469
    %v485 = vadd.f32 %v484, %v470
    %v486 = vadd.f32 %v485, %v471
    %v487 = vadd.f32 %v486, %v472
    %v488 = vadd.f32 %v487, %v473
    %v489 = vadd.f32 %v488, %v474
    %v490 = vadd.f32 %v489, %v475
    %v491 = vadd.f32 %v490, %v476
    %v492 = vadd.f32 %v491, %v477
    %v493 = vadd.f32 %v492, %v478
    %v494 = vrot.slane %v493, 4
    %v495 = vadd.f32 %v493, %v494
    %v496 = vrot.slane %v495, 2
    %v497 = vadd.f32 %v495, %v496
    %v498 = vrot.slane %v497, 1
    %v499 = vadd.f32 %v497, %v498
    %v500 = vmul.f32 %v463, %v463
    %v501 = vmul.f32 %v464, %v464
    %v502 = vmul.f32 %v465, %v465
    %v503 = vmul.f32 %v466, %v466
    %v504 = vmul.f32 %v467, %v467
    %v505 = vmul.f32 %v468, %v468
    %v506 = vmul.f32 %v469, %v469
    %v507 = vmul.f32 %v470, %v470
    %v508 = vmul.f32 %v471, %v471
    %v509 = vmul.f32 %v472, %v472
    %v510 = vmul.f32 %v473, %v473
    %v511 = vmul.f32 %v474, %v474
    %v512 = vmul.f32 %v475, %v475
    %v513 = vmul.f32 %v476, %v476
    %v514 = vmul.f32 %v477, %v477
    %v515 = vmul.f32 %v478, %v478
    %v516 = vadd.f32 %v500, %v501
    %v517 = vadd.f32 %v516, %v502
    %v518 = vadd.f32 %v517, %v503
    %v519 = vadd.f32 %v518, %v504
    %v520 = vadd.f32 %v519, %v505
    %v521 = vadd.f32 %v520, %v506
    %v522 = vadd.f32 %v521, %v507
    %v523 = vadd.f32 %v522, %v508
    %v524 = vadd.f32 %v523, %v509
    %v525 = vadd.f32 %v524, %v510
    %v526 = vadd.f32 %v525, %v511
    %v527 = vadd.f32 %v526, %v512
    %v528 = vadd.f32 %v527, %v513
    %v529 = vadd.f32 %v528, %v514
    %v530 = vadd.f32 %v529, %v515
    %v531 = vrot.slane %v530, 4
    %v532 = vadd.f32 %v530, %v531
    %v533 = vrot.slane %v532, 2
    %v534 = vadd.f32 %v532, %v533
    %v535 = vrot.slane %v534, 1
    %v536 = vadd.f32 %v534, %v535
    %v537 = vmul.f32 %v499, 0.0625
    %v538 = vmul.f32 %v537, 16.0
    %v539 = vmul.f32 %v538, %v537
    %v540 = vsub.f32 %v536, %v539
    %v541 = vmul.f32 %v540, 0.06666667
    %v542 = vadd.f32 %v541, 1e-08
    %v543 = vrcp.pop %v542
    %v544 = vsub.f32 %v353, %v537
    %v545 = vsub.f32 %v358, %v537
    %v546 = vsub.f32 %v363, %v537
    %v547 = vsub.f32 %v368, %v537
    %v548 = vsub.f32 %v373, %v537
    %v549 = vsub.f32 %v378, %v537
    %v550 = vsub.f32 %v383, %v537
    %v551 = vsub.f32 %v388, %v537
    %v552 = vsub.f32 %v393, %v537
    %v553 = vsub.f32 %v398, %v537
    %v554 = vsub.f32 %v403, %v537
    %v555 = vsub.f32 %v408, %v537
    %v556 = vsub.f32 %v413, %v537
    %v557 = vsub.f32 %v418, %v537
    %v558 = vsub.f32 %v423, %v537
    %v559 = vsub.f32 %v428, %v537
    %v560 = vmul.f32 %v544, %v543
    %v561 = vmul.f32 %v545, %v543
    %v562 = vmul.f32 %v546, %v543
    %v563 = vmul.f32 %v547, %v543
    %v564 = vmul.f32 %v548, %v543
    %v565 = vmul.f32 %v549, %v543
    %v566 = vmul.f32 %v550, %v543
    %v567 = vmul.f32 %v551, %v543
    %v568 = vmul.f32 %v552, %v543
    %v569 = vmul.f32 %v553, %v543
    %v570 = vmul.f32 %v554, %v543
    %v571 = vmul.f32 %v555, %v543
    %v572 = vmul.f32 %v556, %v543
    %v573 = vmul.f32 %v557, %v543
    %v574 = vmul.f32 %v558, %v543
    %v575 = vmul.f32 %v559, %v543
    %v576 = vmax.f32 %v560, 0.0
    %v577 = vmax.f32 %v561, 0.0
    %v578 = vmax.f32 %v562, 0.0
    %v579 = vmax.f32 %v563, 0.0
    %v580 = vmax.f32 %v564, 0.0
    %v581 = vmax.f32 %v565, 0.0
    %v582 = vmax.f32 %v566, 0.0
    %v583 = vmax.f32 %v567, 0.0
    %v584 = vmax.f32 %v568, 0.0
    %v585 = vmax.f32 %v569, 0.0
    %v586 = vmax.f32 %v570, 0.0
    %v587 = vmax.f32 %v571, 0.0
    %v588 = vmax.f32 %v572, 0.0
    %v589 = vmax.f32 %v573, 0.0
    %v590 = vmax.f32 %v574, 0.0
    %v591 = vmax.f32 %v575, 0.0
    %v592 = vsel %vm447, %v576, 0.0
    %v593 = vsel %vm448, %v577, 0.0
    %v594 = vsel %vm449, %v578, 0.0
    %v595 = vsel %vm450, %v579, 0.0
    %v596 = vsel %vm451, %v580, 0.0
    %v597 = vsel %vm452, %v581, 0.0
    %v598 = vsel %vm453, %v582, 0.0
    %v599 = vsel %vm454, %v583, 0.0
    %v600 = vsel %vm455, %v584, 0.0
    %v601 = vsel %vm456, %v585, 0.0
    %v602 = vsel %vm457, %v586, 0.0
    %v603 = vsel %vm458, %v587, 0.0
    %v604 = vsel %vm459, %v588, 0.0
    %v605 = vsel %vm460, %v589, 0.0
    %v606 = vsel %vm461, %v590, 0.0
    %v607 = vsel %vm462, %v591, 0.0
    %v608 = vadd.f32 %v592, %v593
    %v609 = vadd.f32 %v608, %v594
    %v610 = vadd.f32 %v609, %v595
    %v611 = vadd.f32 %v610, %v596
    %v612 = vadd.f32 %v611, %v597
    %v613 = vadd.f32 %v612, %v598
    %v614 = vadd.f32 %v613, %v599
    %v615 = vadd.f32 %v614, %v600
    %v616 = vadd.f32 %v615, %v601
    %v617 = vadd.f32 %v616, %v602
    %v618 = vadd.f32 %v617, %v603
    %v619 = vadd.f32 %v618, %v604
    %v620 = vadd.f32 %v619, %v605
    %v621 = vadd.f32 %v620, %v606
    %v622 = vadd.f32 %v621, %v607
    %v623 = vrot.slane %v622, 4
    %v624 = vadd.f32 %v622, %v623
    %v625 = vrot.slane %v624, 2
    %v626 = vadd.f32 %v624, %v625
    %v627 = vrot.slane %v626, 1
    %v628 = vadd.f32 %v626, %v627
    %v629 = vmul.f32 %v592, %v592
    %v630 = vmul.f32 %v593, %v593
    %v631 = vmul.f32 %v594, %v594
    %v632 = vmul.f32 %v595, %v595
    %v633 = vmul.f32 %v596, %v596
    %v634 = vmul.f32 %v597, %v597
    %v635 = vmul.f32 %v598, %v598
    %v636 = vmul.f32 %v599, %v599
    %v637 = vmul.f32 %v600, %v600
    %v638 = vmul.f32 %v601, %v601
    %v639 = vmul.f32 %v602, %v602
    %v640 = vmul.f32 %v603, %v603
    %v641 = vmul.f32 %v604, %v604
    %v642 = vmul.f32 %v605, %v605
    %v643 = vmul.f32 %v606, %v606
    %v644 = vmul.f32 %v607, %v607
    %v645 = vadd.f32 %v629, %v630
    %v646 = vadd.f32 %v645, %v631
    %v647 = vadd.f32 %v646, %v632
    %v648 = vadd.f32 %v647, %v633
    %v649 = vadd.f32 %v648, %v634
    %v650 = vadd.f32 %v649, %v635
    %v651 = vadd.f32 %v650, %v636
    %v652 = vadd.f32 %v651, %v637
    %v653 = vadd.f32 %v652, %v638
    %v654 = vadd.f32 %v653, %v639
    %v655 = vadd.f32 %v654, %v640
    %v656 = vadd.f32 %v655, %v641
    %v657 = vadd.f32 %v656, %v642
    %v658 = vadd.f32 %v657, %v643
    %v659 = vadd.f32 %v658, %v644
    %v660 = vrot.slane %v659, 4
    %v661 = vadd.f32 %v659, %v660
    %v662 = vrot.slane %v661, 2
    %v663 = vadd.f32 %v661, %v662
    %v664 = vrot.slane %v663, 1
    %v665 = vadd.f32 %v663, %v664
    %v666 = vmul.f32 %v628, 0.0625
    %v667 = vmul.f32 %v666, 16.0
    %v668 = vmul.f32 %v667, %v666
    %v669 = vsub.f32 %v665, %v668
    %v670 = vmul.f32 %v669, 0.06666667
    %v671 = vadd.f32 %v670, 1e-08
    %v672 = vrcp.pop %v671
    %v673 = vsub.f32 %v576, %v666
    %v674 = vsub.f32 %v577, %v666
    %v675 = vsub.f32 %v578, %v666
    %v676 = vsub.f32 %v579, %v666
    %v677 = vsub.f32 %v580, %v666
    %v678 = vsub.f32 %v581, %v666
    %v679 = vsub.f32 %v582, %v666
    %v680 = vsub.f32 %v583, %v666
    %v681 = vsub.f32 %v584, %v666
    %v682 = vsub.f32 %v585, %v666
    %v683 = vsub.f32 %v586, %v666
    %v684 = vsub.f32 %v587, %v666
    %v685 = vsub.f32 %v588, %v666
    %v686 = vsub.f32 %v589, %v666
    %v687 = vsub.f32 %v590, %v666
    %v688 = vsub.f32 %v591, %v666
    %v689 = vmul.f32 %v673, %v672
    %v690 = vmul.f32 %v674, %v672
    %v691 = vmul.f32 %v675, %v672
    %v692 = vmul.f32 %v676, %v672
    %v693 = vmul.f32 %v677, %v672
    %v694 = vmul.f32 %v678, %v672
    %v695 = vmul.f32 %v679, %v672
    %v696 = vmul.f32 %v680, %v672
    %v697 = vmul.f32 %v681, %v672
    %v698 = vmul.f32 %v682, %v672
    %v699 = vmul.f32 %v683, %v672
    %v700 = vmul.f32 %v684, %v672
    %v701 = vmul.f32 %v685, %v672
    %v702 = vmul.f32 %v686, %v672
    %v703 = vmul.f32 %v687, %v672
    %v704 = vmul.f32 %v688, %v672
    %v705 = vld [vmem:[%s6] sm:$0xff]
    %v706 = vld [vmem:[%s6 + $0x8] sm:$0xff]
    %v707 = vld [vmem:[%s6 + $0x10] sm:$0xff]
    %v708 = vld [vmem:[%s6 + $0x18] sm:$0xff]
    %v709 = vld [vmem:[%s6 + $0x20] sm:$0xff]
    %v710 = vld [vmem:[%s6 + $0x28] sm:$0xff]
    %v711 = vld [vmem:[%s6 + $0x30] sm:$0xff]
    %v712 = vld [vmem:[%s6 + $0x38] sm:$0xff]
    %v713 = vld [vmem:[%s6 + $0x40] sm:$0xff]
    %v714 = vld [vmem:[%s6 + $0x48] sm:$0xff]
    %v715 = vld [vmem:[%s6 + $0x50] sm:$0xff]
    %v716 = vld [vmem:[%s6 + $0x58] sm:$0xff]
    %v717 = vld [vmem:[%s6 + $0x60] sm:$0xff]
    %v718 = vld [vmem:[%s6 + $0x68] sm:$0xff]
    %v719 = vld [vmem:[%s6 + $0x70] sm:$0xff]
    %v720 = vld [vmem:[%s6 + $0x78] sm:$0xff]
    %v721 = vld [vmem:[%s7] sm:$0x1]
    %v723 = vlaneseq
    %v724 = vshrl.u32 %v723, 7
    %v725 = vsub.s32 0, %v724
    %v726 = vrot.slane %v721, %v725
    %728 = vmatprep.subr.mxu0 0.0
    %729 = vmatpush1.msra.mxu0 %v720
    %730 = vmatprep.subr.mxu0 0.0
    %731 = vmatpush1.msra.mxu0 %v719
    %732 = vmatprep.subr.mxu0 0.0
    %733 = vmatpush1.msra.mxu0 %v718
    %734 = vmatprep.subr.mxu0 0.0
    %735 = vmatpush1.msra.mxu0 %v717
    %736 = vmatprep.subr.mxu0 0.0
    %737 = vmatpush1.msra.mxu0 %v716
    %738 = vmatprep.subr.mxu0 0.0
    %739 = vmatpush1.msra.mxu0 %v715
    %740 = vmatprep.subr.mxu0 0.0
    %741 = vmatpush1.msra.mxu0 %v714
    %742 = vmatprep.subr.mxu0 0.0
    %743 = vmatpush1.msra.mxu0 %v713
    %744 = vmatprep.subr.mxu0 0.0
    %745 = vmatpush1.msra.mxu0 %v712
    %746 = vmatprep.subr.mxu0 0.0
    %747 = vmatpush1.msra.mxu0 %v711
    %748 = vmatprep.subr.mxu0 0.0
    %749 = vmatpush1.msra.mxu0 %v710
    %750 = vmatprep.subr.mxu0 0.0
    %751 = vmatpush1.msra.mxu0 %v709
    %752 = vmatprep.subr.mxu0 0.0
    %753 = vmatpush1.msra.mxu0 %v708
    %754 = vmatprep.subr.mxu0 0.0
    %755 = vmatpush1.msra.mxu0 %v707
    %756 = vmatprep.subr.mxu0 0.0
    %757 = vmatpush1.msra.mxu0 %v706
    %758 = vmatprep.subr.mxu0 0.0
    %759 = vmatpush1.msra.mxu0 %v705
    %760 = vmatprep.subr.mxu0 0.0
    %761 = vmatpush2.msra.mxu0 0.0
    %762 = vmatprep.subr.mxu0 0.0
    %763 = vmatpush2.msra.mxu0 0.0
    %764 = vmatprep.subr.mxu0 0.0
    %765 = vmatpush2.msra.mxu0 0.0
    %766 = vmatprep.subr.mxu0 0.0
    %767 = vmatpush2.msra.mxu0 0.0
    %768 = vmatprep.subr.mxu0 0.0
    %769 = vmatpush2.msra.mxu0 0.0
    %770 = vmatprep.subr.mxu0 0.0
    %771 = vmatpush2.msra.mxu0 0.0
    %772 = vmatprep.subr.mxu0 0.0
    %773 = vmatpush2.msra.mxu0 0.0
    %774 = vmatprep.subr.mxu0 0.0
    %775 = vmatpush2.msra.mxu0 0.0
    %776 = vmatprep.subr.mxu0 0.0
    %777 = vmatpush2.msra.mxu0 0.0
    %778 = vmatprep.subr.mxu0 0.0
    %779 = vmatpush2.msra.mxu0 0.0
    %780 = vmatprep.subr.mxu0 0.0
    %781 = vmatpush2.msra.mxu0 0.0
    %782 = vmatprep.subr.mxu0 0.0
    %783 = vmatpush2.msra.mxu0 0.0
    %784 = vmatprep.subr.mxu0 0.0
    %785 = vmatpush2.msra.mxu0 0.0
    %786 = vmatprep.subr.mxu0 0.0
    %787 = vmatpush2.msra.mxu0 0.0
    %788 = vmatprep.subr.mxu0 0.0
    %789 = vmatpush2.msra.mxu0 0.0
    %790 = vmatprep.subr.mxu0 0.0
    %791 = vmatpush2.msra.mxu0 0.0
    %792 = vmatprep.mubr.f32.mxu0 0.0
    %793 = vmatmul.mubr.f32.gmra.mxu0 %v689
    %v794 = vpop.f32.mrf.mxu0
    %v795 = vadd.f32 %v726, %v794
    %v796 = vpop.f32.mrf.mxu0
    %797 = vmatprep.mubr.f32.mxu0 0.0
    %798 = vmatmul.mubr.f32.gmra.mxu0 %v690
    %v799 = vpop.f32.mrf.mxu0
    %v800 = vadd.f32 %v726, %v799
    %v801 = vpop.f32.mrf.mxu0
    %802 = vmatprep.mubr.f32.mxu0 0.0
    %803 = vmatmul.mubr.f32.gmra.mxu0 %v691
    %v804 = vpop.f32.mrf.mxu0
    %v805 = vadd.f32 %v726, %v804
    %v806 = vpop.f32.mrf.mxu0
    %807 = vmatprep.mubr.f32.mxu0 0.0
    %808 = vmatmul.mubr.f32.gmra.mxu0 %v692
    %v809 = vpop.f32.mrf.mxu0
    %v810 = vadd.f32 %v726, %v809
    %v811 = vpop.f32.mrf.mxu0
    %812 = vmatprep.mubr.f32.mxu0 0.0
    %813 = vmatmul.mubr.f32.gmra.mxu0 %v693
    %v814 = vpop.f32.mrf.mxu0
    %v815 = vadd.f32 %v726, %v814
    %v816 = vpop.f32.mrf.mxu0
    %817 = vmatprep.mubr.f32.mxu0 0.0
    %818 = vmatmul.mubr.f32.gmra.mxu0 %v694
    %v819 = vpop.f32.mrf.mxu0
    %v820 = vadd.f32 %v726, %v819
    %v821 = vpop.f32.mrf.mxu0
    %822 = vmatprep.mubr.f32.mxu0 0.0
    %823 = vmatmul.mubr.f32.gmra.mxu0 %v695
    %v824 = vpop.f32.mrf.mxu0
    %v825 = vadd.f32 %v726, %v824
    %v826 = vpop.f32.mrf.mxu0
    %827 = vmatprep.mubr.f32.mxu0 0.0
    %828 = vmatmul.mubr.f32.gmra.mxu0 %v696
    %v829 = vpop.f32.mrf.mxu0
    %v830 = vadd.f32 %v726, %v829
    %v831 = vpop.f32.mrf.mxu0
    %832 = vmatprep.mubr.f32.mxu0 0.0
    %833 = vmatmul.mubr.f32.gmra.mxu0 %v697
    %v834 = vpop.f32.mrf.mxu0
    %v835 = vadd.f32 %v726, %v834
    %v836 = vpop.f32.mrf.mxu0
    %837 = vmatprep.mubr.f32.mxu0 0.0
    %838 = vmatmul.mubr.f32.gmra.mxu0 %v698
    %v839 = vpop.f32.mrf.mxu0
    %v840 = vadd.f32 %v726, %v839
    %v841 = vpop.f32.mrf.mxu0
    %842 = vmatprep.mubr.f32.mxu0 0.0
    %843 = vmatmul.mubr.f32.gmra.mxu0 %v699
    %v844 = vpop.f32.mrf.mxu0
    %v845 = vadd.f32 %v726, %v844
    %v846 = vpop.f32.mrf.mxu0
    %847 = vmatprep.mubr.f32.mxu0 0.0
    %848 = vmatmul.mubr.f32.gmra.mxu0 %v700
    %v849 = vpop.f32.mrf.mxu0
    %v850 = vadd.f32 %v726, %v849
    %v851 = vpop.f32.mrf.mxu0
    %852 = vmatprep.mubr.f32.mxu0 0.0
    %853 = vmatmul.mubr.f32.gmra.mxu0 %v701
    %v854 = vpop.f32.mrf.mxu0
    %v855 = vadd.f32 %v726, %v854
    %v856 = vpop.f32.mrf.mxu0
    %857 = vmatprep.mubr.f32.mxu0 0.0
    %858 = vmatmul.mubr.f32.gmra.mxu0 %v702
    %v859 = vpop.f32.mrf.mxu0
    %v860 = vadd.f32 %v726, %v859
    %v861 = vpop.f32.mrf.mxu0
    %862 = vmatprep.mubr.f32.mxu0 0.0
    %863 = vmatmul.mubr.f32.gmra.mxu0 %v703
    %v864 = vpop.f32.mrf.mxu0
    %v865 = vadd.f32 %v726, %v864
    %v866 = vpop.f32.mrf.mxu0
    %867 = vmatprep.mubr.f32.mxu0 0.0
    %868 = vmatmul.mubr.f32.gmra.mxu0 %v704
    %v869 = vpop.f32.mrf.mxu0
    %v870 = vadd.f32 %v726, %v869
    %v871 = vpop.f32.mrf.mxu0
    %872 = vdwg.mxu0
    %v873 = vmax.f32 %v795, 0.0
    %v874 = vmax.f32 %v800, 0.0
    %v875 = vmax.f32 %v805, 0.0
    %v876 = vmax.f32 %v810, 0.0
    %v877 = vmax.f32 %v815, 0.0
    %v878 = vmax.f32 %v820, 0.0
    %v879 = vmax.f32 %v825, 0.0
    %v880 = vmax.f32 %v830, 0.0
    %v881 = vmax.f32 %v835, 0.0
    %v882 = vmax.f32 %v840, 0.0
    %v883 = vmax.f32 %v845, 0.0
    %v884 = vmax.f32 %v850, 0.0
    %v885 = vmax.f32 %v855, 0.0
    %v886 = vmax.f32 %v860, 0.0
    %v887 = vmax.f32 %v865, 0.0
    %v888 = vmax.f32 %v870, 0.0
    %v889 = vld [vmem:[%s0] sm:$0xff]
    %v890 = vmul.f32 %v889, %v889
    %891 = vadd.xlane.f32.xlu0 %v890
    %v892 = vpop.xlane.xlu0 %891
    %v893 = vrsqrt.pop %v892
    %v894 = vmul.f32 %v893, 5.0
    %v895 = vmul.f32 %v889, %v894
    %v896 = vmul.f32 %v873, %v873
    %v897 = vmul.f32 %v874, %v874
    %v898 = vmul.f32 %v875, %v875
    %v899 = vmul.f32 %v876, %v876
    %v900 = vmul.f32 %v877, %v877
    %v901 = vmul.f32 %v878, %v878
    %v902 = vmul.f32 %v879, %v879
    %v903 = vmul.f32 %v880, %v880
    %v904 = vmul.f32 %v881, %v881
    %v905 = vmul.f32 %v882, %v882
    %v906 = vmul.f32 %v883, %v883
    %v907 = vmul.f32 %v884, %v884
    %v908 = vmul.f32 %v885, %v885
    %v909 = vmul.f32 %v886, %v886
    %v910 = vmul.f32 %v887, %v887
    %v911 = vmul.f32 %v888, %v888
    %912 = vadd.xlane.f32.xlu0 %v896
    %v913 = vpop.xlane.xlu0 %912
    %914 = vadd.xlane.f32.xlu0 %v897
    %v915 = vpop.xlane.xlu0 %914
    %916 = vadd.xlane.f32.xlu0 %v898
    %v917 = vpop.xlane.xlu0 %916
    %918 = vadd.xlane.f32.xlu0 %v899
    %v919 = vpop.xlane.xlu0 %918
    %920 = vadd.xlane.f32.xlu0 %v900
    %v921 = vpop.xlane.xlu0 %920
    %922 = vadd.xlane.f32.xlu0 %v901
    %v923 = vpop.xlane.xlu0 %922
    %924 = vadd.xlane.f32.xlu0 %v902
    %v925 = vpop.xlane.xlu0 %924
    %926 = vadd.xlane.f32.xlu0 %v903
    %v927 = vpop.xlane.xlu0 %926
    %928 = vadd.xlane.f32.xlu0 %v904
    %v929 = vpop.xlane.xlu0 %928
    %930 = vadd.xlane.f32.xlu0 %v905
    %v931 = vpop.xlane.xlu0 %930
    %932 = vadd.xlane.f32.xlu0 %v906
    %v933 = vpop.xlane.xlu0 %932
    %934 = vadd.xlane.f32.xlu0 %v907
    %v935 = vpop.xlane.xlu0 %934
    %936 = vadd.xlane.f32.xlu0 %v908
    %v937 = vpop.xlane.xlu0 %936
    %938 = vadd.xlane.f32.xlu0 %v909
    %v939 = vpop.xlane.xlu0 %938
    %940 = vadd.xlane.f32.xlu0 %v910
    %v941 = vpop.xlane.xlu0 %940
    %942 = vadd.xlane.f32.xlu0 %v911
    %v943 = vpop.xlane.xlu0 %942
    %v944 = vsel %vm63, %v913, 1.0
    %v945 = vsel %vm64, %v915, 1.0
    %v946 = vsel %vm65, %v917, 1.0
    %v947 = vsel %vm66, %v919, 1.0
    %v948 = vsel %vm67, %v921, 1.0
    %v949 = vsel %vm68, %v923, 1.0
    %v950 = vsel %vm69, %v925, 1.0
    %v951 = vsel %vm70, %v927, 1.0
    %v952 = vsel %vm71, %v929, 1.0
    %v953 = vsel %vm72, %v931, 1.0
    %v954 = vsel %vm73, %v933, 1.0
    %v955 = vsel %vm74, %v935, 1.0
    %v956 = vsel %vm75, %v937, 1.0
    %v957 = vsel %vm76, %v939, 1.0
    %v958 = vsel %vm77, %v941, 1.0
    %v959 = vsel %vm78, %v943, 1.0
    %v960 = vrsqrt.pop %v944
    %v961 = vrsqrt.pop %v945
    %v962 = vrsqrt.pop %v946
    %v963 = vrsqrt.pop %v947
    %v964 = vrsqrt.pop %v948
    %v965 = vrsqrt.pop %v949
    %v966 = vrsqrt.pop %v950
    %v967 = vrsqrt.pop %v951
    %v968 = vrsqrt.pop %v952
    %v969 = vrsqrt.pop %v953
    %v970 = vrsqrt.pop %v954
    %v971 = vrsqrt.pop %v955
    %v972 = vrsqrt.pop %v956
    %v973 = vrsqrt.pop %v957
    %v974 = vrsqrt.pop %v958
    %v975 = vrsqrt.pop %v959
    %v976 = vmul.f32 %v960, 5.0
    %v977 = vmul.f32 %v961, 5.0
    %v978 = vmul.f32 %v962, 5.0
    %v979 = vmul.f32 %v963, 5.0
    %v980 = vmul.f32 %v964, 5.0
    %v981 = vmul.f32 %v965, 5.0
    %v982 = vmul.f32 %v966, 5.0
    %v983 = vmul.f32 %v967, 5.0
    %v984 = vmul.f32 %v968, 5.0
    %v985 = vmul.f32 %v969, 5.0
    %v986 = vmul.f32 %v970, 5.0
    %v987 = vmul.f32 %v971, 5.0
    %v988 = vmul.f32 %v972, 5.0
    %v989 = vmul.f32 %v973, 5.0
    %v990 = vmul.f32 %v974, 5.0
    %v991 = vmul.f32 %v975, 5.0
    %v992 = vmul.f32 %v873, %v976
    %v993 = vmul.f32 %v874, %v977
    %v994 = vmul.f32 %v875, %v978
    %v995 = vmul.f32 %v876, %v979
    %v996 = vmul.f32 %v877, %v980
    %v997 = vmul.f32 %v878, %v981
    %v998 = vmul.f32 %v879, %v982
    %v999 = vmul.f32 %v880, %v983
    %v1000 = vmul.f32 %v881, %v984
    %v1001 = vmul.f32 %v882, %v985
    %v1002 = vmul.f32 %v883, %v986
    %v1003 = vmul.f32 %v884, %v987
    %v1004 = vmul.f32 %v885, %v988
    %v1005 = vmul.f32 %v886, %v989
    %v1006 = vmul.f32 %v887, %v990
    %v1007 = vmul.f32 %v888, %v991
    %1008 = vmatprep.subr.mxu0 0.0
    %1009 = vmatpush1.xpose.msra.mxu0 %v1007
    %1010 = vmatprep.subr.mxu0 0.0
    %1011 = vmatpush1.xpose.msra.mxu0 %v1006
    %1012 = vmatprep.subr.mxu0 0.0
    %1013 = vmatpush1.xpose.msra.mxu0 %v1005
    %1014 = vmatprep.subr.mxu0 0.0
    %1015 = vmatpush1.xpose.msra.mxu0 %v1004
    %1016 = vmatprep.subr.mxu0 0.0
    %1017 = vmatpush1.xpose.msra.mxu0 %v1003
    %1018 = vmatprep.subr.mxu0 0.0
    %1019 = vmatpush1.xpose.msra.mxu0 %v1002
    %1020 = vmatprep.subr.mxu0 0.0
    %1021 = vmatpush1.xpose.msra.mxu0 %v1001
    %1022 = vmatprep.subr.mxu0 0.0
    %1023 = vmatpush1.xpose.msra.mxu0 %v1000
    %1024 = vmatprep.subr.mxu0 0.0
    %1025 = vmatpush1.xpose.msra.mxu0 %v999
    %1026 = vmatprep.subr.mxu0 0.0
    %1027 = vmatpush1.xpose.msra.mxu0 %v998
    %1028 = vmatprep.subr.mxu0 0.0
    %1029 = vmatpush1.xpose.msra.mxu0 %v997
    %1030 = vmatprep.subr.mxu0 0.0
    %1031 = vmatpush1.xpose.msra.mxu0 %v996
    %1032 = vmatprep.subr.mxu0 0.0
    %1033 = vmatpush1.xpose.msra.mxu0 %v995
    %1034 = vmatprep.subr.mxu0 0.0
    %1035 = vmatpush1.xpose.msra.mxu0 %v994
    %1036 = vmatprep.subr.mxu0 0.0
    %1037 = vmatpush1.xpose.msra.mxu0 %v993
    %1038 = vmatprep.subr.mxu0 0.0
    %1039 = vmatpush1.xpose.msra.mxu0 %v992
    %1040 = vmatprep.subr.mxu0 0.0
    %1041 = vmatpush2.xpose.msra.mxu0 0.0
    %1042 = vmatprep.subr.mxu0 0.0
    %1043 = vmatpush2.xpose.msra.mxu0 0.0
    %1044 = vmatprep.subr.mxu0 0.0
    %1045 = vmatpush2.xpose.msra.mxu0 0.0
    %1046 = vmatprep.subr.mxu0 0.0
    %1047 = vmatpush2.xpose.msra.mxu0 0.0
    %1048 = vmatprep.subr.mxu0 0.0
    %1049 = vmatpush2.xpose.msra.mxu0 0.0
    %1050 = vmatprep.subr.mxu0 0.0
    %1051 = vmatpush2.xpose.msra.mxu0 0.0
    %1052 = vmatprep.subr.mxu0 0.0
    %1053 = vmatpush2.xpose.msra.mxu0 0.0
    %1054 = vmatprep.subr.mxu0 0.0
    %1055 = vmatpush2.xpose.msra.mxu0 0.0
    %1056 = vmatprep.subr.mxu0 0.0
    %1057 = vmatpush2.xpose.msra.mxu0 0.0
    %1058 = vmatprep.subr.mxu0 0.0
    %1059 = vmatpush2.xpose.msra.mxu0 0.0
    %1060 = vmatprep.subr.mxu0 0.0
    %1061 = vmatpush2.xpose.msra.mxu0 0.0
    %1062 = vmatprep.subr.mxu0 0.0
    %1063 = vmatpush2.xpose.msra.mxu0 0.0
    %1064 = vmatprep.subr.mxu0 0.0
    %1065 = vmatpush2.xpose.msra.mxu0 0.0
    %1066 = vmatprep.subr.mxu0 0.0
    %1067 = vmatpush2.xpose.msra.mxu0 0.0
    %1068 = vmatprep.subr.mxu0 0.0
    %1069 = vmatpush2.xpose.msra.mxu0 0.0
    %1070 = vmatprep.subr.mxu0 0.0
    %1071 = vmatpush2.xpose.msra.mxu0 0.0
    %1072 = vmatprep.mubr.f32.mxu0 0.0
    %1073 = vmatmul.mubr.f32.gmra.mxu0 %v895
    %v1074 = vpop.f32.mrf.mxu0
    %v1075 = vadd.f32 0.0, %v1074
    %v1076 = vpop.f32.mrf.mxu0
    %1077 = vdwg.mxu0
    %1078 = vst [vmem:[#allocation2] sm:$0xff] %v1075
    // Predicated region
    $region34: #{cnzsl_forward.1} parent=1 // pred_check
      _
    $region35: #{cnzsl_forward.1} parent=1 // pred_check_branch
      %1080 = sbr.rel (0) target = $region37
    $region36: #{cnzsl_forward.1} parent=1 // pred_region
      %s1082 = ssub.s32 128, 128
      %1083 = vsyncadd [#allocation3], %s1082
      %s1085 = sshll.u32 [#allocation2], 4
      %s1086 = int_to_ptr.vmem [resolvable:$true] %s1085
      %1088 = dma.vmem_to_hbm [thread:$0]  %s1086, 128, %s8, [#allocation3]
    $region37: #{cnzsl_forward.1} parent=1 // pred_fallthru
      _
    // Predicated region
    $region38: #{cnzsl_forward.1} parent=1 // pred_check
      _
    $region39: #{cnzsl_forward.1} parent=1 // pred_check_branch
      %1090 = sbr.rel (0) target = $region41
    $region40: #{cnzsl_forward.1} parent=1 // pred_region
      %1091 = dma.done [#allocation3], 128
    $region41: #{cnzsl_forward.1} parent=1 // pred_fallthru
      _
    %1092 = vsyncpa [#allocation3], 1

</llo_original>
